<compile_context>
chip_gen: v6e
topology: v6e:2x2x1
jax: 0.10.0
libtpu: 0.0.40
codegen_flags: <defaults>
</compile_context>

<pallas_src>
import jax
import jax.numpy as jnp
from jax.experimental import pallas as pl
from jax.experimental.pallas import tpu as pltpu


def _conv_stats_kernel(p_ref, w_ref, y_ref, s_ref):
    """Conv tile (single fused MXU matmul) + per-channel partial GN stats.

    p_ref: (1, 9*Cin, hw_tile)  bf16 im2col patches for this (batch, hw) tile
    w_ref: (Cout, 9*Cin)        bf16 reshaped conv weight (whole)
    y_ref: (1, Cout, hw_tile)   f32 conv output tile (lane-dense)
    s_ref: (1, 1, Cout, 2)      f32 per-channel [sum, sum_sq] for this tile
    """
    y = jnp.dot(w_ref[...], p_ref[0], preferred_element_type=jnp.float32)
    y_ref[0] = y
    # Lane-axis (XLU) reductions; stats stay in f32.
    s_ref[0, 0, :, 0:1] = jnp.sum(y, axis=1, keepdims=True)
    s_ref[0, 0, :, 1:2] = jnp.sum(y * y, axis=1, keepdims=True)


def _norm_relu_kernel(y_ref, scale_ref, shift_ref, o_ref):
    """Folded GroupNorm affine + ReLU: out = max(y*scale + shift, 0).

    y_ref:     (1, Cout, hw_tile) f32 conv output tile
    scale_ref: (1, Cout, 1)       f32 folded per-(sample, channel) scale
    shift_ref: (1, Cout, 1)       f32 folded per-(sample, channel) shift
    o_ref:     (1, Cout, hw_tile) f32 output tile (lane-dense, unmasked stores)
    """
    o_ref[0] = jnp.maximum(y_ref[0] * scale_ref[0] + shift_ref[0], 0.0)


def _pick_hw_tile(hw, target=2048):
    """Largest multiple of 128 dividing hw, capped at `target` lanes."""
    if hw % 128 != 0:
        return hw  # full-dim block is exempt from the 128-lane rule
    t = min(target, hw)
    t -= t % 128
    while hw % t != 0:
        t -= 128
    return t


def conv2d_gn_relu(x_nchw, w_oihw, gamma, beta, num_groups, eps=1e-6,
                   hw_tile=None):
    """Matches Conv2dReLU.forward (Conv2d 3x3 s=1 p=1 no-bias -> GN -> ReLU)."""
    B, Cin, H, W = x_nchw.shape
    Cout, Cin_w, KH, KW = w_oihw.shape
    assert Cin_w == Cin
    assert (KH, KW) == (3, 3), "kernel hard-codes 3x3, stride=1, padding=1, bias=False"
    assert Cout % num_groups == 0
    pad = 1
    HW = H * W
    Kc = Cin * KH * KW

    if hw_tile is None:
        hw_tile = _pick_hw_tile(HW)
    assert HW % hw_tile == 0 and (hw_tile % 128 == 0 or hw_tile == HW)
    T = HW // hw_tile

    # --- wrapper-side im2col: kernel sees one contiguous (9*Cin, HW) operand ---
    x_pad = jnp.pad(x_nchw.astype(jnp.float32),
                    ((0, 0), (0, 0), (pad, pad), (pad, pad)))
    taps = jnp.stack([x_pad[:, :, kh:kh + H, kw:kw + W]
                      for kh in range(KH) for kw in range(KW)], axis=2)
    patches = taps.reshape(B, Kc, HW).astype(jnp.bfloat16)   # bf16 MXU inputs
    w2 = w_oihw.reshape(Cout, Kc).astype(jnp.bfloat16)

    cparams = pltpu.CompilerParams(
        dimension_semantics=("parallel", "parallel"),
        vmem_limit_bytes=32 * 1024 * 1024)

    # --- pass 1: conv (single fused matmul per tile) + partial GN stats ---
    y32, part = pl.pallas_call(
        _conv_stats_kernel,
        out_shape=(jax.ShapeDtypeStruct((B, Cout, HW), jnp.float32),
                   jax.ShapeDtypeStruct((B, T, Cout, 2), jnp.float32)),
        grid=(B, T),
        in_specs=[
            pl.BlockSpec((1, Kc, hw_tile), lambda b, t: (b, 0, t)),
            pl.BlockSpec((Cout, Kc), lambda b, t: (0, 0)),
        ],
        out_specs=(
            pl.BlockSpec((1, Cout, hw_tile), lambda b, t: (b, 0, t)),
            pl.BlockSpec((1, 1, Cout, 2), lambda b, t: (b, t, 0, 0)),
        ),
        compiler_params=cparams,
    )(patches, w2)

    # --- tiny wrapper fold: per-(sample, group) stats -> folded per-channel affine ---
    cpg = Cout // num_groups
    n = cpg * HW
    sums = part.sum(axis=1)                                        # (B, Cout, 2)
    g_sum = sums[..., 0].reshape(B, num_groups, cpg).sum(-1)       # (B, G)
    g_sq = sums[..., 1].reshape(B, num_groups, cpg).sum(-1)        # (B, G)
    mean = g_sum / n
    var = g_sq / n - mean * mean
    inv = jax.lax.rsqrt(var + eps)                                 # (B, G)
    inv_c = jnp.repeat(inv, cpg, axis=1)                           # (B, Cout)
    mean_c = jnp.repeat(mean, cpg, axis=1)                         # (B, Cout)
    scale_c = inv_c * gamma.astype(jnp.float32)[None, :]
    shift_c = beta.astype(jnp.float32)[None, :] - mean_c * scale_c
    scale3 = scale_c.reshape(B, Cout, 1)
    shift3 = shift_c.reshape(B, Cout, 1)

    # --- pass 2: normalize (folded affine) + ReLU, lane-dense writeback ---
    out_flat = pl.pallas_call(
        _norm_relu_kernel,
        out_shape=jax.ShapeDtypeStruct((B, Cout, HW), jnp.float32),
        grid=(B, T),
        in_specs=[
            pl.BlockSpec((1, Cout, hw_tile), lambda b, t: (b, 0, t)),
            pl.BlockSpec((1, Cout, 1), lambda b, t: (b, 0, 0)),
            pl.BlockSpec((1, Cout, 1), lambda b, t: (b, 0, 0)),
        ],
        out_specs=pl.BlockSpec((1, Cout, hw_tile), lambda b, t: (b, 0, t)),
        compiler_params=cparams,
    )(y32, scale3, shift3)

    return out_flat.reshape(B, Cout, H, W)


def _reference(x, w, gamma, beta, num_groups, eps=1e-6):
    """Pure-JAX reference (NCHW) for validation."""
    y = jax.lax.conv_general_dilated(
        x.astype(jnp.float32), w.astype(jnp.float32),
        window_strides=(1, 1), padding=((1, 1), (1, 1)),
        dimension_numbers=("NCHW", "OIHW", "NCHW"),
        precision=jax.lax.Precision.HIGHEST)
    B, C, H, W = y.shape
    yr = y.reshape(B, num_groups, C // num_groups, H * W)
    mean = yr.mean(axis=(2, 3), keepdims=True)
    var = ((yr - mean) ** 2).mean(axis=(2, 3), keepdims=True)
    yn = ((yr - mean) * jax.lax.rsqrt(var + eps)).reshape(B, C, H, W)
    out = yn * gamma.reshape(1, C, 1, 1) + beta.reshape(1, C, 1, 1)
    return jnp.maximum(out, 0.0)


if __name__ == "__main__":
    # Small shapes consistent with the module.
    B, Cin, Cout, H, W = 2, 4, 8, 16, 16
    ksize = 3
    num_groups = 16 if Cout % 16 == 0 else Cout // 4   # module's rule -> 2 groups
    eps = 1e-6                                          # module sets GroupNorm eps=1e-06

    key = jax.random.PRNGKey(0)
    kx, kw, kg, kb = jax.random.split(key, 4)
    x = jax.random.normal(kx, (B, Cin, H, W), dtype=jnp.float32)
    fan_in = Cin * ksize * ksize
    bound = 1.0 / (fan_in ** 0.5)
    w = jax.random.uniform(kw, (Cout, Cin, ksize, ksize),
                           minval=-bound, maxval=bound, dtype=jnp.float32)
    gamma = 1.0 + 0.1 * jax.random.normal(kg, (Cout,), dtype=jnp.float32)
    beta = 0.1 * jax.random.normal(kb, (Cout,), dtype=jnp.float32)

    # hw_tile=128 forces T=2 so the spatially-tiled two-pass path is exercised.
    out = conv2d_gn_relu(x, w, gamma, beta, num_groups, eps=eps, hw_tile=128)
    out = jax.block_until_ready(out)

    # Reference uses the same bf16-rounded conv inputs (kernel feeds the MXU in
    # bf16 with f32 accumulation; GroupNorm stats stay f32).
    xq = x.astype(jnp.bfloat16).astype(jnp.float32)
    wq = w.astype(jnp.bfloat16).astype(jnp.float32)
    ref = _reference(xq, wq, gamma, beta, num_groups, eps)

    assert out.shape == (B, Cout, H, W)
    max_diff = float(jnp.max(jnp.abs(out - ref)))
    assert jnp.allclose(out, ref, rtol=1e-3, atol=1e-3), (
        "mismatch vs reference: max abs diff = %g" % max_diff)

    print("KERNEL_OK")
</pallas_src>

<mosaic_0001>
module attributes {stable_mosaic.version = 11 : i64} {
  func.func @_conv_stats_kernel(%arg0: i32, %arg1: i32, %arg2: memref<1x36x128xbf16, #tpu.memory_space<vmem>>, %arg3: memref<8x36xbf16, #tpu.memory_space<vmem>>, %arg4: memref<1x8x128xf32, #tpu.memory_space<vmem>>, %arg5: memref<1x1x8x2xf32, #tpu.memory_space<vmem>>) attributes {dimension_semantics = [#tpu.dimension_semantics<parallel>, #tpu.dimension_semantics<parallel>], iteration_bounds = array<i64: 2, 2>, scalar_prefetch = 0 : i64, scratch_operands = 0 : i64, tpu.core_type = #tpu.core_type<tc>, window_params = [{transform_indices = @transform_0, window_bounds = array<i64: 1, 36, 128>}, {pipeline_mode = #tpu.pipeline_mode<synchronous>, transform_indices = @transform_1, window_bounds = array<i64: 8, 36>}, {transform_indices = @transform_2, window_bounds = array<i64: 1, 8, 128>}, {transform_indices = @transform_3, window_bounds = array<i64: 1, 1, 8, 2>}]} {
    %c0 = arith.constant 0 : index
    %c0_0 = arith.constant 0 : index
    %0 = vector.load %arg3[%c0, %c0_0] : memref<8x36xbf16, #tpu.memory_space<vmem>>, vector<8x36xbf16>
    %c0_1 = arith.constant 0 : index
    %c0_2 = arith.constant 0 : index
    %c0_3 = arith.constant 0 : index
    %1 = vector.load %arg2[%c0_1, %c0_2, %c0_3] : memref<1x36x128xbf16, #tpu.memory_space<vmem>>, vector<1x36x128xbf16>
    %2 = vector.shape_cast %1 : vector<1x36x128xbf16> to vector<36x128xbf16>
    %cst = arith.constant dense<0.000000e+00> : vector<8x128xf32>
    %3 = tpu.matmul %0, %2, %cst {dimension_numbers = #tpu.dot_dimension_numbers<[1], [0], [0], [1], [0, 0, 1, 1], [], []>} : vector<8x36xbf16>, vector<36x128xbf16>, vector<8x128xf32> -> vector<8x128xf32>
    %c0_4 = arith.constant 0 : index
    %c0_5 = arith.constant 0 : index
    %c0_6 = arith.constant 0 : index
    %4 = vector.load %arg4[%c0_4, %c0_5, %c0_6] : memref<1x8x128xf32, #tpu.memory_space<vmem>>, vector<1x8x128xf32>
    %5 = vector.shape_cast %4 : vector<1x8x128xf32> to vector<8x128xf32>
    %6 = vector.shape_cast %3 : vector<8x128xf32> to vector<1x8x128xf32>
    tpu.vector_store %arg4[%c0_4, %c0_5, %c0_6], %6 {strides = array<i32>} : memref<1x8x128xf32, #tpu.memory_space<vmem>>, vector<1x8x128xf32>,
    %cst_7 = arith.constant dense<0.000000e+00> : vector<8xf32>
    %7 = vector.multi_reduction <add>, %3, %cst_7 [1] : vector<8x128xf32> to vector<8xf32>
    %8 = vector.shape_cast %7 : vector<8xf32> to vector<8x1xf32>
    %c0_8 = arith.constant 0 : index
    %c0_9 = arith.constant 0 : index
    %c0_10 = arith.constant 0 : index
    %c0_11 = arith.constant 0 : index
    %9 = vector.load %arg5[%c0_8, %c0_9, %c0_10, %c0_11] : memref<1x1x8x2xf32, #tpu.memory_space<vmem>>, vector<1x1x8x1xf32>
    %10 = vector.shape_cast %9 : vector<1x1x8x1xf32> to vector<8x1xf32>
    %11 = vector.shape_cast %8 : vector<8x1xf32> to vector<1x1x8x1xf32>
    tpu.vector_store %arg5[%c0_8, %c0_9, %c0_10, %c0_11], %11 {strides = array<i32>} : memref<1x1x8x2xf32, #tpu.memory_space<vmem>>, vector<1x1x8x1xf32>,
    %12 = arith.mulf %3, %3 : vector<8x128xf32>
    %cst_12 = arith.constant dense<0.000000e+00> : vector<8xf32>
    %13 = vector.multi_reduction <add>, %12, %cst_12 [1] : vector<8x128xf32> to vector<8xf32>
    %14 = vector.shape_cast %13 : vector<8xf32> to vector<8x1xf32>
    %c0_13 = arith.constant 0 : index
    %c0_14 = arith.constant 0 : index
    %c0_15 = arith.constant 0 : index
    %c1 = arith.constant 1 : index
    %15 = vector.load %arg5[%c0_13, %c0_14, %c0_15, %c1] : memref<1x1x8x2xf32, #tpu.memory_space<vmem>>, vector<1x1x8x1xf32>
    %16 = vector.shape_cast %15 : vector<1x1x8x1xf32> to vector<8x1xf32>
    %17 = vector.shape_cast %14 : vector<8x1xf32> to vector<1x1x8x1xf32>
    tpu.vector_store %arg5[%c0_13, %c0_14, %c0_15, %c1], %17 {strides = array<i32>} : memref<1x1x8x2xf32, #tpu.memory_space<vmem>>, vector<1x1x8x1xf32>,
    return
  }
  func.func @transform_0(%arg0: i32, %arg1: i32) -> (i32, i32, i32) {
    %c0_i32 = arith.constant 0 : i32
    %c0_i32_0 = arith.constant 0 : i32
    return %arg0, %c0_i32, %arg1 : i32, i32, i32
  }
  func.func @transform_1(%arg0: i32, %arg1: i32) -> (i32, i32) {
    %c0_i32 = arith.constant 0 : i32
    %c0_i32_0 = arith.constant 0 : i32
    %c0_i32_1 = arith.constant 0 : i32
    return %c0_i32, %c0_i32_0 : i32, i32
  }
  func.func @transform_2(%arg0: i32, %arg1: i32) -> (i32, i32, i32) {
    %c0_i32 = arith.constant 0 : i32
    %c0_i32_0 = arith.constant 0 : i32
    return %arg0, %c0_i32, %arg1 : i32, i32, i32
  }
  func.func @transform_3(%arg0: i32, %arg1: i32) -> (i32, i32, i32, i32) {
    %c0_i32 = arith.constant 0 : i32
    %c0_i32_0 = arith.constant 0 : i32
    %c0_i32_1 = arith.constant 0 : i32
    return %arg0, %arg1, %c0_i32, %c0_i32_0 : i32, i32, i32, i32
  }
}

</mosaic_0001>

<llo_original>
// kernel: tpu_custom_call.1
$region0: #{tpu_custom_call.1}
  #allocation0 [shape = 'u32[]', space=smem, size = 0x4, offset = 0x4, fixed_abs, tag = 'smem constant byte address 0x4 - core index']
  #allocation1 [shape = 'u32[144,128]{1,0:T(1,128)}', space=vmem, size = 0x12000, scoped, tag = 'internal scratch']
  %s0 = inlined_call_operand.vmem [shape: bf16[2,36,256], index: 0, kind: input, shape index: {}]
  %s1 = inlined_call_operand.vmem [shape: bf16[8,36], index: 1, kind: input, shape index: {}]
  %s2 = inlined_call_operand.hbm [shape: f32[2,8,256], index: 2, kind: output, shape index: {0}]
  %s3 = inlined_call_operand.vmem [shape: f32[2,2,8,2], index: 3, kind: output, shape index: {1}]
  %4 = xla_tuple %s2, %s3
  %s5 = sld [smem:[#allocation0]]
  $region90: #{tpu_custom_call.1} parent=0
    _
  %s7 = ssub.s32 1, %s5
  %s8 = scalar_select 0, %s7, %s5
  $region1: #{tpu_custom_call.1} parent=0
    #allocation2 [shape = 'u8[20480]{0}', space=vmem, size = 0x5000, scoped, tag = 'input window, operand 0']
    #allocation3 [shape = 'u8[8192]{0}', space=vmem, size = 0x2000, scoped, tag = 'output window, operand 0']
    #allocation4 [shape = 's32[2]{0}', space=sflag, size = 0x8, scoped, tag = 'scoped memory for tpu_custom_call.1']
    %9 = vsyncpa [#allocation4], 0
    %s10 = scalar_lea.sflag [#allocation4], 1
    %11 = vsyncpa %s10, 0
    loop: start=0, step=1, limit=6
    $region2: #{tpu_custom_call.1} parent=1 // loop_pre_header
      _
    $region3: #{tpu_custom_call.1} parent=1 // loop_header
      %s13 = sphi 0, %s17
      %p14 = scmp.ge.s32.totalorder %s13, 6
      %s20 = sphi 0, %s32
      %s21 = sphi 0, %s28
      %s22 = sphi 0, %s20
      %s23 = sphi 0, %s21
      %s24 = sphi 0, %s22
      %s25 = sphi 0, %s23
      %s37 = sphi 0, %s39
      %s40 = sphi 0, %s37
      %s41 = sphi 0, %s40
      %s57 = sphi 0, %s41
      %s61 = sphi 0, %s61
      %s63 = sphi 0, %s61
      %s64 = sphi 0, %s63
      %s78 = sphi 0, %s64
      %s86 = sphi 0, %s88
      %s89 = sphi 0, %s86
      %s90 = sphi 0, %s89
      %s106 = sphi 0, %s90
      %s114 = sphi 0, %s116
      %s117 = sphi 0, %s114
      %s118 = sphi 0, %s117
      %s134 = sphi 0, %s118
    $region4: #{tpu_custom_call.1} parent=1 // loop_header_branch
      %16 = sbr.rel (%p14) target = $region8
    $region5: #{tpu_custom_call.1} parent=1 // loop_body
      %s18 = ssub.s32 %s13, 1
      %s19 = ssub.s32 %s13, 2
      %s26 = sadd.s32 1, %s21
      %p27 = scmp.ge.s32.totalorder %s26, 2
      %s28 = scalar_select %p27, 0, %s26
      %s29 = sadd.s32 1, %s20
      %s30 = scalar_select %p27, %s29, %s20
      %p31 = scmp.ge.s32.totalorder %s30, 2
      %s32 = scalar_select %p31, 0, %s30
      %s33 = ssub.s32 %s20, %s32
      %s34 = ssub.s32 %s21, %s28
      %s35 = sor.u32 %s33, %s34
      %p36 = scmp.eq.s32.totalorder %s35, 0
      %s38 = sadd.s32 %s37, 1
      %s39 = scalar_select %p36, %s37, %s38
      %p42 = pneg %p36
      %p43 = scmp.eq.s32.totalorder %s13, 3
      %p44 = por %p42, %p43
      %p45 = scmp.ne.s32.totalorder %s37, %s40
      %p46 = scmp.eq.s32.totalorder %s13, 0
      %p47 = por %p45, %p46
      %p48 = scmp.ne.s32.totalorder %s37, %s40
      %p49 = scmp.eq.s32.totalorder %s18, 3
      %p50 = por %p48, %p49
      %p51 = scmp.ne.s32.totalorder %s40, %s41
      %p52 = scmp.eq.s32.totalorder %s18, 0
      %p53 = por %p51, %p52
      %p54 = scmp.ne.s32.totalorder %s40, %s41
      %p55 = scmp.eq.s32.totalorder %s19, 3
      %p56 = por %p54, %p55
      %p58 = scmp.ne.s32.totalorder %s41, %s57
      %p59 = scmp.eq.s32.totalorder %s19, 0
      %p60 = por %p58, %p59
      %s62 = sadd.s32 %s61, 1
      %p65 = scmp.eq.s32.totalorder %s13, 3
      %p66 = scmp.ne.s32.totalorder %s61, %s63
      %p67 = scmp.eq.s32.totalorder %s13, 0
      %p68 = por %p66, %p67
      %p69 = scmp.ne.s32.totalorder %s61, %s63
      %p70 = scmp.eq.s32.totalorder %s18, 3
      %p71 = por %p69, %p70
      %p72 = scmp.ne.s32.totalorder %s63, %s64
      %p73 = scmp.eq.s32.totalorder %s18, 0
      %p74 = por %p72, %p73
      %p75 = scmp.ne.s32.totalorder %s63, %s64
      %p76 = scmp.eq.s32.totalorder %s19, 3
      %p77 = por %p75, %p76
      %p79 = scmp.ne.s32.totalorder %s64, %s78
      %p80 = scmp.eq.s32.totalorder %s19, 0
      %p81 = por %p79, %p80
      %s82 = ssub.s32 %s20, %s32
      %s83 = ssub.s32 %s21, %s28
      %s84 = sor.u32 %s82, %s83
      %p85 = scmp.eq.s32.totalorder %s84, 0
      %s87 = sadd.s32 %s86, 1
      %s88 = scalar_select %p85, %s86, %s87
      %p91 = pneg %p85
      %p92 = scmp.eq.s32.totalorder %s13, 3
      %p93 = por %p91, %p92
      %p94 = scmp.ne.s32.totalorder %s86, %s89
      %p95 = scmp.eq.s32.totalorder %s13, 0
      %p96 = por %p94, %p95
      %p97 = scmp.ne.s32.totalorder %s86, %s89
      %p98 = scmp.eq.s32.totalorder %s18, 3
      %p99 = por %p97, %p98
      %p100 = scmp.ne.s32.totalorder %s89, %s90
      %p101 = scmp.eq.s32.totalorder %s18, 0
      %p102 = por %p100, %p101
      %p103 = scmp.ne.s32.totalorder %s89, %s90
      %p104 = scmp.eq.s32.totalorder %s19, 3
      %p105 = por %p103, %p104
      %p107 = scmp.ne.s32.totalorder %s90, %s106
      %p108 = scmp.eq.s32.totalorder %s19, 0
      %p109 = por %p107, %p108
      %s110 = ssub.s32 %s20, %s32
      %s111 = ssub.s32 %s21, %s28
      %s112 = sor.u32 %s110, %s111
      %p113 = scmp.eq.s32.totalorder %s112, 0
      %s115 = sadd.s32 %s114, 1
      %s116 = scalar_select %p113, %s114, %s115
      %p119 = pneg %p113
      %p120 = scmp.eq.s32.totalorder %s13, 3
      %p121 = por %p119, %p120
      %p122 = scmp.ne.s32.totalorder %s114, %s117
      %p123 = scmp.eq.s32.totalorder %s13, 0
      %p124 = por %p122, %p123
      %p125 = scmp.ne.s32.totalorder %s114, %s117
      %p126 = scmp.eq.s32.totalorder %s18, 3
      %p127 = por %p125, %p126
      %p128 = scmp.ne.s32.totalorder %s117, %s118
      %p129 = scmp.eq.s32.totalorder %s18, 0
      %p130 = por %p128, %p129
      %p131 = scmp.ne.s32.totalorder %s117, %s118
      %p132 = scmp.eq.s32.totalorder %s19, 3
      %p133 = por %p131, %p132
      %p135 = scmp.ne.s32.totalorder %s118, %s134
      %p136 = scmp.eq.s32.totalorder %s19, 0
      %p137 = por %p135, %p136
      %p138 = scmp.le.s32.totalorder 1, %s13
      %p139 = scmp.lt.s32.totalorder %s13, 5
      %p140 = pnand %p138, %p139
      %p141 = pneg %p140
      // Predicated region
      $region9: #{tpu_custom_call.1} parent=5 // pred_check
        _
      $region10: #{tpu_custom_call.1} parent=5 // pred_check_branch
        %143 = sbr.rel (%p140) target = $region12
      $region11: #{tpu_custom_call.1} parent=5 // pred_region
        %s144 = ssub.s32 %s13, 1
        // Predicated region
        $region13: #{tpu_custom_call.1} parent=11 // pred_check
          %p145 = pneg %p74
        $region14: #{tpu_custom_call.1} parent=11 // pred_check_branch
          %147 = sbr.rel (%p145) target = $region16
        $region15: #{tpu_custom_call.1} parent=11 // pred_region
          _
        $region16: #{tpu_custom_call.1} parent=11 // pred_fallthru
          _
      $region12: #{tpu_custom_call.1} parent=5 // pred_fallthru
        _
      %p148 = scmp.lt.s32.totalorder %s13, 4
      // Predicated region
      $region17: #{tpu_custom_call.1} parent=5 // pred_check
        %p149 = pneg %p148
      $region18: #{tpu_custom_call.1} parent=5 // pred_check_branch
        %151 = sbr.rel (%p149) target = $region20
      $region19: #{tpu_custom_call.1} parent=5 // pred_region
        // Predicated region
        $region21: #{tpu_custom_call.1} parent=19 // pred_check
          %p152 = pneg %p47
        $region22: #{tpu_custom_call.1} parent=19 // pred_check_branch
          %154 = sbr.rel (%p152) target = $region24
        $region23: #{tpu_custom_call.1} parent=19 // pred_region
          %s155 = sand.u32 %s37, 1
          %s156 = sand.u32 %s37, 1
          %s157 = smul.addr %s156, 20
          %s158 = scalar_lea.vmem [#allocation2], %s157
          %s159 = smul.addr %s20, 10
          %s160 = sadd.s32 %s21, %s159
          %s161 = smul.addr %s160, 4
          %s162 = scalar_lea.vmem %s0, %s161
          // Predicated region
          $region25: #{tpu_custom_call.1} parent=23 // pred_check
            _
          $region26: #{tpu_custom_call.1} parent=23 // pred_check_branch
            %164 = sbr.rel (0) target = $region28
          $region27: #{tpu_custom_call.1} parent=23 // pred_region
            // Predicated region
            $region29: #{tpu_custom_call.1} parent=27 // pred_check
              _
            $region30: #{tpu_custom_call.1} parent=27 // pred_check_branch
              %166 = sbr.rel target = $region32
            $region31: #{tpu_custom_call.1} parent=27 // pred_region
              // Predicated region
              $region44: #{tpu_custom_call.1} parent=31 // pred_check
                _
              $region45: #{tpu_custom_call.1} parent=31 // pred_check_branch
                %190 = sbr.rel (0) target = $region47
              $region46: #{tpu_custom_call.1} parent=31 // pred_region
                loop: start=0, step=1, limit=1
                $region48: #{tpu_custom_call.1} parent=46 // loop_pre_header
                  _
                $region49: #{tpu_custom_call.1} parent=46 // loop_header
                  %s192 = sphi 0, %s196
                  %p193 = scmp.ge.s32.totalorder %s192, 1
                  %s197 = sphi %s162, %s162
                  %s198 = sphi %s158, %s158
                $region50: #{tpu_custom_call.1} parent=46 // loop_header_branch
                  %195 = sbr.rel (%p193) target = $region54
                $region51: #{tpu_custom_call.1} parent=46 // loop_body
                  _
                $region52: #{tpu_custom_call.1} parent=46 // loop_footer
                  %s196 = sadd.s32 1, %s192
                $region53: #{tpu_custom_call.1} parent=46 // loop_footer_branch
                  %191 = sbr.rel target = $region49
                $region54: #{tpu_custom_call.1} parent=46 // loop_exit
                  _
                %s200 = ssub.s32 16, 1
                loop: start=0, step=1, limit=1
                $region55: #{tpu_custom_call.1} parent=46 // loop_pre_header
                  _
                $region56: #{tpu_custom_call.1} parent=46 // loop_header
                  %s202 = sphi 0, %s206
                  %p203 = scmp.ge.s32.totalorder %s202, 1
                  %s207 = sphi %s162, %s162
                  %s208 = sphi %s158, %s158
                $region57: #{tpu_custom_call.1} parent=46 // loop_header_branch
                  %205 = sbr.rel (%p203) target = $region61
                $region58: #{tpu_custom_call.1} parent=46 // loop_body
                  %v209 = vld [vmem:[%s207] sm:%s200]
                  %210 = vst [vmem:[%s208] sm:%s200] %v209
                  %v211 = vld [vmem:[%s207 + $0x8] sm:%s200]
                  %212 = vst [vmem:[%s208 + $0x4] sm:%s200] %v211
                  %v213 = vld [vmem:[%s207 + $0x10] sm:%s200]
                  %214 = vst [vmem:[%s208 + $0x8] sm:%s200] %v213
                  %v215 = vld [vmem:[%s207 + $0x18] sm:%s200]
                  %216 = vst [vmem:[%s208 + $0xc] sm:%s200] %v215
                  %v217 = vld [vmem:[%s207 + $0x20] sm:%s200]
                  %218 = vst [vmem:[%s208 + $0x10] sm:%s200] %v217
                $region59: #{tpu_custom_call.1} parent=46 // loop_footer
                  %s206 = sadd.s32 1, %s202
                $region60: #{tpu_custom_call.1} parent=46 // loop_footer_branch
                  %201 = sbr.rel target = $region56
                $region61: #{tpu_custom_call.1} parent=46 // loop_exit
                  _
              $region47: #{tpu_custom_call.1} parent=31 // pred_fallthru
                _
            $region32: #{tpu_custom_call.1} parent=27 // pred_fallthru
              _
            // Predicated region
            $region33: #{tpu_custom_call.1} parent=27 // pred_check
              _
            $region34: #{tpu_custom_call.1} parent=27 // pred_check_branch
              %168 = sbr.rel (0) target = $region36
            $region35: #{tpu_custom_call.1} parent=27 // pred_region
              %s170 = ssub.s32 16, 1
              loop: start=0, step=1, limit=1
              $region37: #{tpu_custom_call.1} parent=35 // loop_pre_header
                _
              $region38: #{tpu_custom_call.1} parent=35 // loop_header
                %s172 = sphi 0, %s176
                %p173 = scmp.ge.s32.totalorder %s172, 1
                %s177 = sphi %s162, %s162
                %s178 = sphi %s158, %s158
              $region39: #{tpu_custom_call.1} parent=35 // loop_header_branch
                %175 = sbr.rel (%p173) target = $region43
              $region40: #{tpu_custom_call.1} parent=35 // loop_body
                %v179 = vld [vmem:[%s177] sm:%s170]
                %180 = vst [vmem:[%s178] sm:%s170] %v179
                %v181 = vld [vmem:[%s177 + $0x8] sm:%s170]
                %182 = vst [vmem:[%s178 + $0x4] sm:%s170] %v181
                %v183 = vld [vmem:[%s177 + $0x10] sm:%s170]
                %184 = vst [vmem:[%s178 + $0x8] sm:%s170] %v183
                %v185 = vld [vmem:[%s177 + $0x18] sm:%s170]
                %186 = vst [vmem:[%s178 + $0xc] sm:%s170] %v185
                %v187 = vld [vmem:[%s177 + $0x20] sm:%s170]
                %188 = vst [vmem:[%s178 + $0x10] sm:%s170] %v187
              $region41: #{tpu_custom_call.1} parent=35 // loop_footer
                %s176 = sadd.s32 1, %s172
              $region42: #{tpu_custom_call.1} parent=35 // loop_footer_branch
                %171 = sbr.rel target = $region38
              $region43: #{tpu_custom_call.1} parent=35 // loop_exit
                _
            $region36: #{tpu_custom_call.1} parent=27 // pred_fallthru
              _
          $region28: #{tpu_custom_call.1} parent=23 // pred_fallthru
            _
          %219 = vnop
        $region24: #{tpu_custom_call.1} parent=19 // pred_fallthru
          _
      $region20: #{tpu_custom_call.1} parent=5 // pred_fallthru
        _
      %p220 = scmp.le.s32.totalorder 1, %s13
      %p221 = scmp.lt.s32.totalorder %s13, 5
      %p222 = pnand %p220, %p221
      %p223 = pneg %p222
      // Predicated region
      $region62: #{tpu_custom_call.1} parent=5 // pred_check
        _
      $region63: #{tpu_custom_call.1} parent=5 // pred_check_branch
        %225 = sbr.rel (%p222) target = $region65
      $region64: #{tpu_custom_call.1} parent=5 // pred_region
        %s226 = ssub.s32 %s13, 1
        %s227 = sand.u32 %s40, 1
        %s228 = sand.u32 %s40, 1
        %s229 = smul.addr %s228, 20
        %s230 = scalar_lea.vmem [#allocation2], %s229
        // Predicated region
        $region66: #{tpu_custom_call.1} parent=64 // pred_check
          %p231 = pneg %p53
        $region67: #{tpu_custom_call.1} parent=64 // pred_check_branch
          %233 = sbr.rel (%p231) target = $region69
        $region68: #{tpu_custom_call.1} parent=64 // pred_region
          _
        $region69: #{tpu_custom_call.1} parent=64 // pred_fallthru
          _
        %s234 = sand.u32 %s40, 1
        %s235 = sand.u32 %s40, 1
        %s236 = smul.addr %s235, 20
        %s237 = scalar_lea.vmem [#allocation2], %s236
        %p238 = pneg %p53
        %p239 = pneg %p50
        %p240 = pneg %p74
        %p241 = pneg %p71
        %p242 = pneg %p102
        %p243 = pneg %p99
        %s244 = sand.u32 %s89, 1
        %s245 = scalar_lea.sflag [#allocation4], %s244
        %s246 = sand.u32 %s89, 1
        %s247 = smul.addr %s246, 8
        %s248 = scalar_lea.vmem [#allocation3], %s247
        %p249 = pneg %p130
        %p250 = pneg %p127
        %p251 = scmp.lt.s32.totalorder %s22, 1
        %s252 = scalar_select %p251, %s22, 1
        %p253 = scmp.lt.s32.totalorder %s23, 1
        %s254 = scalar_select %p253, %s23, 1
        %s255 = smul.addr %s252, 2
        %s256 = sadd.s32 %s254, %s255
        %s257 = smul.addr %s256, 8
        %s258 = scalar_lea.vmem %s3, %s257
        %p259 = scmp.lt.s32.totalorder %s22, 1
        %s260 = scalar_select %p259, %s22, 1
        %p261 = scmp.lt.s32.totalorder %s23, 1
        %s262 = scalar_select %p261, %s23, 1
        %s263 = smul.addr %s260, 2
        %s264 = sadd.s32 %s262, %s263
        %s265 = smul.addr %s264, 8
        %s266 = scalar_lea.vmem %s3, %s265
        %v268 = vld [vmem:[%s1] sm:$0xf]
        %v269 = vld [vmem:[%s230] sm:$0xf]
        %v270 = vld [vmem:[%s230 + $0x4] sm:$0xf]
        %v271 = vld [vmem:[%s230 + $0x8] sm:$0xf]
        %v272 = vld [vmem:[%s230 + $0xc] sm:$0xf]
        %v273 = vld [vmem:[%s230 + $0x10] sm:$0x3]
        %v279 = vunpack.c.l.b16 %v269
        %v280 = vunpack.c.l.b16 %v270
        %v281 = vunpack.c.l.b16 %v271
        %v282 = vunpack.c.l.b16 %v272
        %v283 = vunpack.c.l.b16 %v273
        %v284 = vpack.c.b16 %v280, %v279
        %v285 = vpack.c.b16 %v282, %v281
        %v286 = vpack.c.b16 %v283, %v283
        %vm289 = vcmask 293888
        %v291 = vsel %vm289, %v268, 0
        %vm293 = vcmask 1041408
        %v295 = vsel %vm293, %v286, 0
        %297 = vmatprep.subr.bf16.mxu0 0
        %298 = vmatpush1.bf16.msra.mxu0 0
        %299 = vmatprep.subr.bf16.mxu0 0
        %300 = vmatpush1.bf16.msra.mxu0 0
        %301 = vmatprep.subr.bf16.mxu0 0
        %302 = vmatpush1.bf16.msra.mxu0 0
        %303 = vmatprep.subr.bf16.mxu0 0
        %304 = vmatpush1.bf16.msra.mxu0 0
        %305 = vmatprep.subr.bf16.mxu0 0
        %306 = vmatpush1.bf16.msra.mxu0 0
        %307 = vmatprep.subr.bf16.mxu0 0
        %308 = vmatpush1.bf16.msra.mxu0 %v295
        %309 = vmatprep.subr.bf16.mxu0 0
        %310 = vmatpush1.bf16.msra.mxu0 %v285
        %311 = vmatprep.subr.bf16.mxu0 0
        %312 = vmatpush1.bf16.msra.mxu0 %v284
        %313 = vmatprep.subr.bf16.mxu0 0
        %314 = vmatpush2.bf16.msra.mxu0 0
        %315 = vmatprep.subr.bf16.mxu0 0
        %316 = vmatpush2.bf16.msra.mxu0 0
        %317 = vmatprep.subr.bf16.mxu0 0
        %318 = vmatpush2.bf16.msra.mxu0 0
        %319 = vmatprep.subr.bf16.mxu0 0
        %320 = vmatpush2.bf16.msra.mxu0 0
        %321 = vmatprep.subr.bf16.mxu0 0
        %322 = vmatpush2.bf16.msra.mxu0 0
        %323 = vmatprep.subr.bf16.mxu0 0
        %324 = vmatpush2.bf16.msra.mxu0 0
        %325 = vmatprep.subr.bf16.mxu0 0
        %326 = vmatpush2.bf16.msra.mxu0 0
        %327 = vmatprep.subr.bf16.mxu0 0
        %328 = vmatpush2.bf16.msra.mxu0 0
        %329 = vmatprep.mubr.bf16.mxu0 0
        %330 = vmatmul.mubr.bf16.gmra.mxu0 %v291
        %v331 = vpop.f32.mrf.mxu0
        %v332 = vadd.f32 0.0, %v331
        %v333 = vpop.f32.mrf.mxu0
        %v334 = vpop.f32.mrf.mxu0
        %v335 = vpop.f32.mrf.mxu0
        %336 = vdwg.mxu0
        %337 = vst [vmem:[%s248] sm:$0xff] %v332
        %338 = vadd.xlane.f32.xlu0 %v332
        %v339 = vpop.xlane.xlu0 %338
        %vm340 = vcmask 7168
        %341 = vst.msk [vmem:[%s266] sm:$0xff] %vm340, %v339
        %v342 = vmul.f32 %v332, %v332
        %343 = vadd.xlane.f32.xlu0 %v342
        %v344 = vpop.xlane.xlu0 %343
        %vm345 = vcmask 15368
        %346 = vst.msk [vmem:[%s266] sm:$0xff] %vm345, %v344
        %s347 = sand.u32 %s89, 1
        %s348 = scalar_lea.sflag [#allocation4], %s347
        %s349 = sand.u32 %s89, 1
        %s350 = smul.addr %s349, 8
        %s351 = scalar_lea.vmem [#allocation3], %s350
        %p352 = scmp.lt.s32.totalorder %s22, 1
        %s353 = scalar_select %p352, %s22, 1
        %p354 = scmp.lt.s32.totalorder %s23, 1
        %s355 = scalar_select %p354, %s23, 1
        %s356 = smul.addr %s353, 2
        %s357 = sadd.s32 %s355, %s356
        %s358 = smul.addr %s357, 8
        %s359 = scalar_lea.vmem %s3, %s358
        // Predicated region
        $region70: #{tpu_custom_call.1} parent=64 // pred_check
          %p360 = pneg %p99
        $region71: #{tpu_custom_call.1} parent=64 // pred_check_branch
          %362 = sbr.rel (%p360) target = $region73
        $region72: #{tpu_custom_call.1} parent=64 // pred_region
          %s364 = ssub.s32 128, 128
          %365 = vsyncadd %s348, %s364
          %s366 = smul.addr %s22, 2
          %s367 = sadd.s32 %s23, %s366
          %s368 = smul.addr %s367, 128
          %s369 = scalar_lea.hbm %s2, %s368
          %s371 = sshll.u32 %s351, 4
          %s372 = int_to_ptr.vmem [resolvable:$true] %s371
          %374 = dma.vmem_to_hbm [thread:$0]  %s372, 128, %s369, %s348
        $region73: #{tpu_custom_call.1} parent=64 // pred_fallthru
          _
        // Predicated region
        $region74: #{tpu_custom_call.1} parent=64 // pred_check
          %p375 = pneg %p127
        $region75: #{tpu_custom_call.1} parent=64 // pred_check_branch
          %377 = sbr.rel (%p375) target = $region77
        $region76: #{tpu_custom_call.1} parent=64 // pred_region
          _
        $region77: #{tpu_custom_call.1} parent=64 // pred_fallthru
          _
      $region65: #{tpu_custom_call.1} parent=5 // pred_fallthru
        _
      %p378 = scmp.le.s32.totalorder 2, %s13
      // Predicated region
      $region78: #{tpu_custom_call.1} parent=5 // pred_check
        %p379 = pneg %p378
      $region79: #{tpu_custom_call.1} parent=5 // pred_check_branch
        %381 = sbr.rel (%p379) target = $region81
      $region80: #{tpu_custom_call.1} parent=5 // pred_region
        %s382 = ssub.s32 %s13, 2
        // Predicated region
        $region82: #{tpu_custom_call.1} parent=80 // pred_check
          %p383 = pneg %p105
        $region83: #{tpu_custom_call.1} parent=80 // pred_check_branch
          %385 = sbr.rel (%p383) target = $region85
        $region84: #{tpu_custom_call.1} parent=80 // pred_region
          %s386 = sand.u32 %s90, 1
          %s387 = scalar_lea.sflag [#allocation4], %s386
          %s388 = sand.u32 %s90, 1
          %s389 = smul.addr %s388, 8
          %s390 = scalar_lea.vmem [#allocation3], %s389
          %391 = dma.done %s387, 128
        $region85: #{tpu_custom_call.1} parent=80 // pred_fallthru
          _
        // Predicated region
        $region86: #{tpu_custom_call.1} parent=80 // pred_check
          %p392 = pneg %p133
        $region87: #{tpu_custom_call.1} parent=80 // pred_check_branch
          %394 = sbr.rel (%p392) target = $region89
        $region88: #{tpu_custom_call.1} parent=80 // pred_region
          %p395 = scmp.lt.s32.totalorder %s24, 1
          %s396 = scalar_select %p395, %s24, 1
          %p397 = scmp.lt.s32.totalorder %s25, 1
          %s398 = scalar_select %p397, %s25, 1
          %s399 = smul.addr %s396, 2
          %s400 = sadd.s32 %s398, %s399
          %s401 = smul.addr %s400, 8
          %s402 = scalar_lea.vmem %s3, %s401
        $region89: #{tpu_custom_call.1} parent=80 // pred_fallthru
          _
      $region81: #{tpu_custom_call.1} parent=5 // pred_fallthru
        _
    $region6: #{tpu_custom_call.1} parent=1 // loop_footer
      %s17 = sadd.s32 1, %s13
    $region7: #{tpu_custom_call.1} parent=1 // loop_footer_branch
      %12 = sbr.rel target = $region3
    $region8: #{tpu_custom_call.1} parent=1 // loop_exit
      _
    %403 = vsyncpa [#allocation4], 1
    %s404 = scalar_lea.sflag [#allocation4], 1
    %405 = vsyncpa %s404, 1

</llo_original>
